<compile_context>
chip_gen: v6e
topology: v6e:2x2x1
jax: 0.10.0
libtpu: 0.0.40
codegen_flags: <defaults>
</compile_context>

<pallas_src>
import jax
import jax.numpy as jnp
from jax.experimental import pallas as pl
from jax.experimental.pallas import tpu as pltpu

EPS = 1e-5


# ---------------- pass 1: phase-matmul + per-channel sum / sumsq -------------
def _matmul_stats_kernel(p_ref, w_ref, y_ref, psum_ref, psumsq_ref):
    # p: (K, tm)  w: (C_eff, K)  y: (C_eff, tm)  psum/psumsq: (C_eff, 1)
    @pl.when(pl.program_id(0) == 0)
    def _():
        psum_ref[...] = jnp.zeros_like(psum_ref)
        psumsq_ref[...] = jnp.zeros_like(psumsq_ref)

    y = jnp.dot(w_ref[...], p_ref[...], preferred_element_type=jnp.float32)
    y_ref[...] = y
    # Global-BN partial stats: reduce along the lane (M) axis, accumulate
    # across grid steps in the resident (constant-index) accumulator outputs.
    psum_ref[...] += jnp.sum(y, axis=1, keepdims=True)
    psumsq_ref[...] += jnp.sum(y * y, axis=1, keepdims=True)


# ---------------- pass 2: folded BatchNorm (one FMA) + ReLU ------------------
def _bn_relu_kernel(y_ref, scale_ref, shift_ref, o_ref):
    # y/o: (C_eff, tm)   scale/shift: (C_eff, 1) broadcast along lanes
    o_ref[...] = jnp.maximum(
        y_ref[...] * scale_ref[...] + shift_ref[...], 0.0
    ).astype(o_ref.dtype)


def upsample3x_block_deconv(x, wt, bias, gamma, beta, *, block_m=256):
    """x: (N, C_in, H, W) float32 (NCHW).
    wt: ConvTranspose2d weight, shape (C_in, C_out, 4, 4).
    bias, gamma, beta: (C_out,).
    Returns (N, C_out, 2H, 2W) float32 (NCHW)."""
    del bias  # per-channel bias is exactly cancelled by BN's mean subtraction

    N, C_in, H, W = x.shape
    C_out = wt.shape[1]
    Ho, Wo = 2 * H, 2 * W
    K = 9 * C_in
    C_eff = 4 * C_out          # channel order: (ry, rx, c_out)

    x = x.astype(jnp.float32)

    # --- wrapper glue: shared 3x3-neighborhood patches, K-major / M on lanes --
    # patches_T[(c, dy, dx), (n, h, w)] = x[n, c, h + dy - 1, w + dx - 1] (0-pad)
    x_pad = jnp.pad(x, ((0, 0), (0, 0), (1, 1), (1, 1)))
    taps = jnp.stack(
        [x_pad[:, :, dy:dy + H, dx:dx + W] for dy in range(3) for dx in range(3)],
        axis=0)                                            # (9, N, C_in, H, W)
    patches_T = taps.transpose(2, 0, 1, 3, 4).reshape(K, N * H * W)

    # --- 4 phase weights packed into one (C_eff, K) matrix --------------------
    # Output pixel (2my+ry, 2mx+rx) uses the 2x2 sub-window
    #   {(dy, dx) = (ry+dyl, rx+dxl) : dyl, dxl in {0,1}} of the 3x3 window,
    # with flipped transposed-conv tap (ky', kx') = (2*dyl+ry, 2*dxl+rx).
    w_flip = jnp.flip(wt, axis=(2, 3)).astype(jnp.float32)   # (C_in, C_out, 4, 4)
    w_comb = jnp.zeros((2, 2, C_out, C_in, 3, 3), jnp.float32)
    for ry in range(2):
        for rx in range(2):
            for dyl in range(2):
                for dxl in range(2):
                    w_comb = w_comb.at[ry, rx, :, :, ry + dyl, rx + dxl].set(
                        w_flip[:, :, 2 * dyl + ry, 2 * dxl + rx].T)
    w_t = w_comb.reshape(C_eff, K)

    # --- tile the M (= N*H*W) axis; zero-pad (pads contribute 0 to the stats) -
    M_total = N * H * W
    num_tiles = max(1, pl.cdiv(M_total, block_m))
    M_pad = num_tiles * block_m
    if M_pad != M_total:
        patches_T = jnp.pad(patches_T, ((0, 0), (0, M_pad - M_total)))

    # NOTE: size block_m so 2*(K + 2*C_eff)*block_m*4B + 2*C_eff*K*4B stays well
    # under the per-generation VMEM budget (64 MiB on v7x, 128 MiB on v5e/v6e).
    y_slab, psum, psumsq = pl.pallas_call(
        _matmul_stats_kernel,
        out_shape=(
            jax.ShapeDtypeStruct((C_eff, M_pad), jnp.float32),
            jax.ShapeDtypeStruct((C_eff, 1), jnp.float32),
            jax.ShapeDtypeStruct((C_eff, 1), jnp.float32),
        ),
        grid_spec=pltpu.PrefetchScalarGridSpec(
            num_scalar_prefetch=0,
            grid=(num_tiles,),
            in_specs=[
                pl.BlockSpec((K, block_m), lambda i: (0, i)),     # patches tile
                pl.BlockSpec((C_eff, K), lambda i: (0, 0)),       # resident weight
            ],
            out_specs=[
                pl.BlockSpec((C_eff, block_m), lambda i: (0, i)), # streamed y
                pl.BlockSpec((C_eff, 1), lambda i: (0, 0)),       # sum accumulator
                pl.BlockSpec((C_eff, 1), lambda i: (0, 0)),       # sumsq accumulator
            ],
        ),
        compiler_params=pltpu.CompilerParams(
            dimension_semantics=("arbitrary",),   # stats accumulate across M tiles
            vmem_limit_bytes=64 * 1024 * 1024,
        ),
    )(patches_T, w_t)

    # --- global BatchNorm stats -> folded per-channel scale/shift (tiny) ------
    count = jnp.float32(N * Ho * Wo)
    s = jnp.sum(psum[:, 0].reshape(2, 2, C_out), axis=(0, 1))
    ss = jnp.sum(psumsq[:, 0].reshape(2, 2, C_out), axis=(0, 1))
    mean = s / count
    var = jnp.maximum(ss / count - mean * mean, 0.0)       # biased variance
    scale = gamma.astype(jnp.float32) / jnp.sqrt(var + EPS)
    shift = beta.astype(jnp.float32) - mean * scale
    scale_eff = jnp.broadcast_to(scale[None, None, :], (2, 2, C_out)).reshape(C_eff, 1)
    shift_eff = jnp.broadcast_to(shift[None, None, :], (2, 2, C_out)).reshape(C_eff, 1)

    out_slab = pl.pallas_call(
        _bn_relu_kernel,
        out_shape=jax.ShapeDtypeStruct((C_eff, M_pad), jnp.float32),
        grid_spec=pltpu.PrefetchScalarGridSpec(
            num_scalar_prefetch=0,
            grid=(num_tiles,),
            in_specs=[
                pl.BlockSpec((C_eff, block_m), lambda i: (0, i)),
                pl.BlockSpec((C_eff, 1), lambda i: (0, 0)),
                pl.BlockSpec((C_eff, 1), lambda i: (0, 0)),
            ],
            out_specs=pl.BlockSpec((C_eff, block_m), lambda i: (0, i)),
        ),
        compiler_params=pltpu.CompilerParams(
            dimension_semantics=("parallel",),   # independent tiles -> 2 TCs on v7x
            vmem_limit_bytes=64 * 1024 * 1024,
        ),
    )(y_slab, scale_eff, shift_eff)

    # --- interleave the 4 phases back into NCHW -------------------------------
    out = (out_slab[:, :M_total]
           .reshape(2, 2, C_out, N, H, W)      # (ry, rx, c, n, h, w)
           .transpose(3, 2, 4, 0, 5, 1)        # (n, c, h, ry, w, rx)
           .reshape(N, C_out, Ho, Wo))
    return out


def _reference(x, wt, bias, gamma, beta):
    """Pure-JAX reference using lax.conv_general_dilated (== ConvTranspose2d)."""
    k, s, p = 4, 2, 1
    w_conv = jnp.flip(wt, axis=(2, 3)).transpose(1, 0, 2, 3)  # (C_out, C_in, k, k)
    pp = k - 1 - p
    y = jax.lax.conv_general_dilated(
        x, w_conv, window_strides=(1, 1), padding=[(pp, pp), (pp, pp)],
        lhs_dilation=(s, s),
        dimension_numbers=("NCHW", "OIHW", "NCHW"),
    ) + bias[None, :, None, None]
    mean = y.mean(axis=(0, 2, 3), keepdims=True)
    var = ((y - mean) ** 2).mean(axis=(0, 2, 3), keepdims=True)
    y = gamma[None, :, None, None] * (y - mean) / jnp.sqrt(var + EPS) \
        + beta[None, :, None, None]
    return jnp.maximum(y, 0.0)


if __name__ == "__main__":
    key = jax.random.PRNGKey(0)
    k_x, k_w, k_b, k_g, k_be = jax.random.split(key, 5)

    N, C_in, C_out, H, W = 2, 4, 8, 16, 16

    x = jax.random.normal(k_x, (N, C_in, H, W), dtype=jnp.float32)
    # ConvTranspose2d weight shape: (in_channels, out_channels, kH, kW)
    wt = 0.1 * jax.random.normal(k_w, (C_in, C_out, 4, 4), dtype=jnp.float32)
    bias = 0.1 * jax.random.normal(k_b, (C_out,), dtype=jnp.float32)
    gamma = 1.0 + 0.1 * jax.random.normal(k_g, (C_out,), dtype=jnp.float32)
    beta = 0.1 * jax.random.normal(k_be, (C_out,), dtype=jnp.float32)

    out = upsample3x_block_deconv(x, wt, bias, gamma, beta, block_m=256)
    out = jax.block_until_ready(out)
    assert out.shape == (N, C_out, 2 * H, 2 * W), out.shape

    ref = jax.block_until_ready(_reference(x, wt, bias, gamma, beta))
    assert jnp.allclose(out, ref, atol=1e-4, rtol=1e-4), float(jnp.abs(out - ref).max())

    print("KERNEL_OK")
</pallas_src>

<mosaic_0001>
module attributes {stable_mosaic.version = 11 : i64} {
  func.func @_matmul_stats_kernel(%arg0: i32, %arg1: memref<36x256xf32, #tpu.memory_space<vmem>>, %arg2: memref<32x36xf32, #tpu.memory_space<vmem>>, %arg3: memref<32x256xf32, #tpu.memory_space<vmem>>, %arg4: memref<32x1xf32, #tpu.memory_space<vmem>>, %arg5: memref<32x1xf32, #tpu.memory_space<vmem>>) attributes {dimension_semantics = [#tpu.dimension_semantics<arbitrary>], iteration_bounds = array<i64: 2>, scalar_prefetch = 0 : i64, scratch_operands = 0 : i64, tpu.core_type = #tpu.core_type<tc>, window_params = [{transform_indices = @transform_0, window_bounds = array<i64: 36, 256>}, {pipeline_mode = #tpu.pipeline_mode<synchronous>, transform_indices = @transform_1, window_bounds = array<i64: 32, 36>}, {transform_indices = @transform_2, window_bounds = array<i64: 32, 256>}, {pipeline_mode = #tpu.pipeline_mode<synchronous>, transform_indices = @transform_3, window_bounds = array<i64: 32, 1>}, {pipeline_mode = #tpu.pipeline_mode<synchronous>, transform_indices = @transform_4, window_bounds = array<i64: 32, 1>}]} {
    %c0_i32 = arith.constant 0 : i32
    %0 = arith.cmpi eq, %arg0, %c0_i32 : i32
    %1 = arith.extui %0 : i1 to i32
    %c0_i32_0 = arith.constant 0 : i32
    %2 = arith.cmpi ne, %1, %c0_i32_0 : i32
    scf.if %2 {
      %cst_16 = arith.constant 0.000000e+00 : f32
      %18 = vector.broadcast %cst_16 : f32 to vector<32x1xf32>
      %c0_17 = arith.constant 0 : index
      %c0_18 = arith.constant 0 : index
      %19 = vector.load %arg4[%c0_17, %c0_18] : memref<32x1xf32, #tpu.memory_space<vmem>>, vector<32x1xf32>
      tpu.vector_store %arg4[%c0_17, %c0_18], %18 {strides = array<i32>} : memref<32x1xf32, #tpu.memory_space<vmem>>, vector<32x1xf32>,
      %cst_19 = arith.constant 0.000000e+00 : f32
      %20 = vector.broadcast %cst_19 : f32 to vector<32x1xf32>
      %c0_20 = arith.constant 0 : index
      %c0_21 = arith.constant 0 : index
      %21 = vector.load %arg5[%c0_20, %c0_21] : memref<32x1xf32, #tpu.memory_space<vmem>>, vector<32x1xf32>
      tpu.vector_store %arg5[%c0_20, %c0_21], %20 {strides = array<i32>} : memref<32x1xf32, #tpu.memory_space<vmem>>, vector<32x1xf32>,
    } else {
    }
    %c0 = arith.constant 0 : index
    %c0_1 = arith.constant 0 : index
    %3 = vector.load %arg2[%c0, %c0_1] : memref<32x36xf32, #tpu.memory_space<vmem>>, vector<32x36xf32>
    %c0_2 = arith.constant 0 : index
    %c0_3 = arith.constant 0 : index
    %4 = vector.load %arg1[%c0_2, %c0_3] : memref<36x256xf32, #tpu.memory_space<vmem>>, vector<36x256xf32>
    %cst = arith.constant dense<0.000000e+00> : vector<32x256xf32>
    %5 = tpu.matmul %3, %4, %cst {dimension_numbers = #tpu.dot_dimension_numbers<[1], [0], [0], [1], [0, 0, 1, 1], [], []>} : vector<32x36xf32>, vector<36x256xf32>, vector<32x256xf32> -> vector<32x256xf32>
    %c0_4 = arith.constant 0 : index
    %c0_5 = arith.constant 0 : index
    %6 = vector.load %arg3[%c0_4, %c0_5] : memref<32x256xf32, #tpu.memory_space<vmem>>, vector<32x256xf32>
    tpu.vector_store %arg3[%c0_4, %c0_5], %5 {strides = array<i32>} : memref<32x256xf32, #tpu.memory_space<vmem>>, vector<32x256xf32>,
    %c0_6 = arith.constant 0 : index
    %c0_7 = arith.constant 0 : index
    %7 = vector.load %arg4[%c0_6, %c0_7] : memref<32x1xf32, #tpu.memory_space<vmem>>, vector<32x1xf32>
    %cst_8 = arith.constant dense<0.000000e+00> : vector<32xf32>
    %8 = vector.multi_reduction <add>, %5, %cst_8 [1] : vector<32x256xf32> to vector<32xf32>
    %9 = vector.shape_cast %8 : vector<32xf32> to vector<32x1xf32>
    %10 = arith.addf %7, %9 : vector<32x1xf32>
    %c0_9 = arith.constant 0 : index
    %c0_10 = arith.constant 0 : index
    %11 = vector.load %arg4[%c0_9, %c0_10] : memref<32x1xf32, #tpu.memory_space<vmem>>, vector<32x1xf32>
    tpu.vector_store %arg4[%c0_9, %c0_10], %10 {strides = array<i32>} : memref<32x1xf32, #tpu.memory_space<vmem>>, vector<32x1xf32>,
    %c0_11 = arith.constant 0 : index
    %c0_12 = arith.constant 0 : index
    %12 = vector.load %arg5[%c0_11, %c0_12] : memref<32x1xf32, #tpu.memory_space<vmem>>, vector<32x1xf32>
    %13 = arith.mulf %5, %5 : vector<32x256xf32>
    %cst_13 = arith.constant dense<0.000000e+00> : vector<32xf32>
    %14 = vector.multi_reduction <add>, %13, %cst_13 [1] : vector<32x256xf32> to vector<32xf32>
    %15 = vector.shape_cast %14 : vector<32xf32> to vector<32x1xf32>
    %16 = arith.addf %12, %15 : vector<32x1xf32>
    %c0_14 = arith.constant 0 : index
    %c0_15 = arith.constant 0 : index
    %17 = vector.load %arg5[%c0_14, %c0_15] : memref<32x1xf32, #tpu.memory_space<vmem>>, vector<32x1xf32>
    tpu.vector_store %arg5[%c0_14, %c0_15], %16 {strides = array<i32>} : memref<32x1xf32, #tpu.memory_space<vmem>>, vector<32x1xf32>,
    return
  }
  func.func @transform_0(%arg0: i32) -> (i32, i32) {
    %c0_i32 = arith.constant 0 : i32
    %c0_i32_0 = arith.constant 0 : i32
    return %c0_i32, %arg0 : i32, i32
  }
  func.func @transform_1(%arg0: i32) -> (i32, i32) {
    %c0_i32 = arith.constant 0 : i32
    %c0_i32_0 = arith.constant 0 : i32
    %c0_i32_1 = arith.constant 0 : i32
    return %c0_i32, %c0_i32_0 : i32, i32
  }
  func.func @transform_2(%arg0: i32) -> (i32, i32) {
    %c0_i32 = arith.constant 0 : i32
    %c0_i32_0 = arith.constant 0 : i32
    return %c0_i32, %arg0 : i32, i32
  }
  func.func @transform_3(%arg0: i32) -> (i32, i32) {
    %c0_i32 = arith.constant 0 : i32
    %c0_i32_0 = arith.constant 0 : i32
    %c0_i32_1 = arith.constant 0 : i32
    return %c0_i32, %c0_i32_0 : i32, i32
  }
  func.func @transform_4(%arg0: i32) -> (i32, i32) {
    %c0_i32 = arith.constant 0 : i32
    %c0_i32_0 = arith.constant 0 : i32
    %c0_i32_1 = arith.constant 0 : i32
    return %c0_i32, %c0_i32_0 : i32, i32
  }
}

</mosaic_0001>

<llo_original>
// kernel: tpu_custom_call.1
$region0: #{tpu_custom_call.1}
  #allocation0 [shape = 'u32[]', space=smem, size = 0x4, offset = 0x4, fixed_abs, tag = 'smem constant byte address 0x4 - core index']
  #allocation1 [shape = 'u32[144,128]{1,0:T(1,128)}', space=vmem, size = 0x12000, scoped, tag = 'internal scratch']
  %s0 = inlined_call_operand.hbm [shape: f32[36,512], index: 0, kind: input, shape index: {}]
  %s1 = inlined_call_operand.hbm [shape: f32[32,36], index: 1, kind: input, shape index: {}]
  %s2 = inlined_call_operand.hbm [shape: f32[32,512], index: 2, kind: output, shape index: {0}]
  %s3 = inlined_call_operand.vmem [shape: f32[32,1], index: 3, kind: output, shape index: {1}]
  %s4 = inlined_call_operand.vmem [shape: f32[32,1], index: 4, kind: output, shape index: {2}]
  %5 = xla_tuple %s2, %s3, %s4
  %s6 = sld [smem:[#allocation0]]
  $region69: #{tpu_custom_call.1} parent=0
    _
  %s8 = ssub.s32 1, %s6
  %s9 = scalar_select 0, %s8, %s6
  $region1: #{tpu_custom_call.1} parent=0
    #allocation2 [shape = 'u8[81920]{0}', space=vmem, size = 0x14000, scoped, tag = 'input window, operand 0']
    #allocation3 [shape = 's32[2]{0}', space=sflag, size = 0x8, scoped, tag = 'scoped memory for tpu_custom_call.1']
    #allocation4 [shape = 's32[2]{0}', space=sflag, size = 0x8, scoped, tag = 'scoped memory for tpu_custom_call.1']
    #allocation5 [shape = 'u8[16384]{0}', space=vmem, size = 0x4000, scoped, tag = 'input window, operand 1, single buffered']
    #allocation6 [shape = 's32[1]{0}', space=sflag, size = 0x4, scoped, tag = 'scoped memory for tpu_custom_call.1']
    #allocation7 [shape = 'u8[65536]{0}', space=vmem, size = 0x10000, scoped, tag = 'output window, operand 0']
    %10 = vsyncpa [#allocation3], 0
    %s11 = scalar_lea.sflag [#allocation3], 1
    %12 = vsyncpa %s11, 0
    %13 = vsyncpa [#allocation6], 0
    %14 = vsyncpa [#allocation4], 0
    %s15 = scalar_lea.sflag [#allocation4], 1
    %16 = vsyncpa %s15, 0
    loop: start=0, step=1, limit=4
    $region2: #{tpu_custom_call.1} parent=1 // loop_pre_header
      _
    $region3: #{tpu_custom_call.1} parent=1 // loop_header
      %s18 = sphi 0, %s22
      %p19 = scmp.ge.s32.totalorder %s18, 4
      %s28 = sphi 0, %s30
      %s31 = sphi 0, %s28
      %s32 = sphi 0, %s31
      %s48 = sphi 0, %s32
      %s52 = sphi 0, %s52
      %s54 = sphi 0, %s52
      %s55 = sphi 0, %s54
      %s69 = sphi 0, %s55
      %s75 = sphi 0, %s77
      %s78 = sphi 0, %s75
      %s79 = sphi 0, %s78
      %s95 = sphi 0, %s79
      %s99 = sphi 0, %s99
      %s101 = sphi 0, %s99
      %s102 = sphi 0, %s101
      %s116 = sphi 0, %s102
      %s120 = sphi 0, %s120
      %s122 = sphi 0, %s120
      %s123 = sphi 0, %s122
      %s137 = sphi 0, %s123
    $region4: #{tpu_custom_call.1} parent=1 // loop_header_branch
      %21 = sbr.rel (%p19) target = $region8
    $region5: #{tpu_custom_call.1} parent=1 // loop_body
      %s23 = ssub.s32 %s18, 1
      %s24 = ssub.s32 %s18, 2
      %s25 = sadd.s32 %s18, 1
      %s26 = ssub.s32 %s18, %s25
      %p27 = scmp.eq.s32.totalorder %s26, 0
      %s29 = sadd.s32 %s28, 1
      %s30 = scalar_select %p27, %s28, %s29
      %p33 = pneg %p27
      %p34 = scmp.eq.s32.totalorder %s18, 1
      %p35 = por %p33, %p34
      %p36 = scmp.ne.s32.totalorder %s28, %s31
      %p37 = scmp.eq.s32.totalorder %s18, 0
      %p38 = por %p36, %p37
      %p39 = scmp.ne.s32.totalorder %s28, %s31
      %p40 = scmp.eq.s32.totalorder %s23, 1
      %p41 = por %p39, %p40
      %p42 = scmp.ne.s32.totalorder %s31, %s32
      %p43 = scmp.eq.s32.totalorder %s23, 0
      %p44 = por %p42, %p43
      %p45 = scmp.ne.s32.totalorder %s31, %s32
      %p46 = scmp.eq.s32.totalorder %s24, 1
      %p47 = por %p45, %p46
      %p49 = scmp.ne.s32.totalorder %s32, %s48
      %p50 = scmp.eq.s32.totalorder %s24, 0
      %p51 = por %p49, %p50
      %s53 = sadd.s32 %s52, 1
      %p56 = scmp.eq.s32.totalorder %s18, 1
      %p57 = scmp.ne.s32.totalorder %s52, %s54
      %p58 = scmp.eq.s32.totalorder %s18, 0
      %p59 = por %p57, %p58
      %p60 = scmp.ne.s32.totalorder %s52, %s54
      %p61 = scmp.eq.s32.totalorder %s23, 1
      %p62 = por %p60, %p61
      %p63 = scmp.ne.s32.totalorder %s54, %s55
      %p64 = scmp.eq.s32.totalorder %s23, 0
      %p65 = por %p63, %p64
      %p66 = scmp.ne.s32.totalorder %s54, %s55
      %p67 = scmp.eq.s32.totalorder %s24, 1
      %p68 = por %p66, %p67
      %p70 = scmp.ne.s32.totalorder %s55, %s69
      %p71 = scmp.eq.s32.totalorder %s24, 0
      %p72 = por %p70, %p71
      %s73 = ssub.s32 %s18, %s25
      %p74 = scmp.eq.s32.totalorder %s73, 0
      %s76 = sadd.s32 %s75, 1
      %s77 = scalar_select %p74, %s75, %s76
      %p80 = pneg %p74
      %p81 = scmp.eq.s32.totalorder %s18, 1
      %p82 = por %p80, %p81
      %p83 = scmp.ne.s32.totalorder %s75, %s78
      %p84 = scmp.eq.s32.totalorder %s18, 0
      %p85 = por %p83, %p84
      %p86 = scmp.ne.s32.totalorder %s75, %s78
      %p87 = scmp.eq.s32.totalorder %s23, 1
      %p88 = por %p86, %p87
      %p89 = scmp.ne.s32.totalorder %s78, %s79
      %p90 = scmp.eq.s32.totalorder %s23, 0
      %p91 = por %p89, %p90
      %p92 = scmp.ne.s32.totalorder %s78, %s79
      %p93 = scmp.eq.s32.totalorder %s24, 1
      %p94 = por %p92, %p93
      %p96 = scmp.ne.s32.totalorder %s79, %s95
      %p97 = scmp.eq.s32.totalorder %s24, 0
      %p98 = por %p96, %p97
      %s100 = sadd.s32 %s99, 1
      %p103 = scmp.eq.s32.totalorder %s18, 1
      %p104 = scmp.ne.s32.totalorder %s99, %s101
      %p105 = scmp.eq.s32.totalorder %s18, 0
      %p106 = por %p104, %p105
      %p107 = scmp.ne.s32.totalorder %s99, %s101
      %p108 = scmp.eq.s32.totalorder %s23, 1
      %p109 = por %p107, %p108
      %p110 = scmp.ne.s32.totalorder %s101, %s102
      %p111 = scmp.eq.s32.totalorder %s23, 0
      %p112 = por %p110, %p111
      %p113 = scmp.ne.s32.totalorder %s101, %s102
      %p114 = scmp.eq.s32.totalorder %s24, 1
      %p115 = por %p113, %p114
      %p117 = scmp.ne.s32.totalorder %s102, %s116
      %p118 = scmp.eq.s32.totalorder %s24, 0
      %p119 = por %p117, %p118
      %s121 = sadd.s32 %s120, 1
      %p124 = scmp.eq.s32.totalorder %s18, 1
      %p125 = scmp.ne.s32.totalorder %s120, %s122
      %p126 = scmp.eq.s32.totalorder %s18, 0
      %p127 = por %p125, %p126
      %p128 = scmp.ne.s32.totalorder %s120, %s122
      %p129 = scmp.eq.s32.totalorder %s23, 1
      %p130 = por %p128, %p129
      %p131 = scmp.ne.s32.totalorder %s122, %s123
      %p132 = scmp.eq.s32.totalorder %s23, 0
      %p133 = por %p131, %p132
      %p134 = scmp.ne.s32.totalorder %s122, %s123
      %p135 = scmp.eq.s32.totalorder %s24, 1
      %p136 = por %p134, %p135
      %p138 = scmp.ne.s32.totalorder %s123, %s137
      %p139 = scmp.eq.s32.totalorder %s24, 0
      %p140 = por %p138, %p139
      %p141 = scmp.le.s32.totalorder 1, %s18
      %p142 = scmp.lt.s32.totalorder %s18, 3
      %p143 = pnand %p141, %p142
      %p144 = pneg %p143
      // Predicated region
      $region9: #{tpu_custom_call.1} parent=5 // pred_check
        _
      $region10: #{tpu_custom_call.1} parent=5 // pred_check_branch
        %146 = sbr.rel (%p143) target = $region12
      $region11: #{tpu_custom_call.1} parent=5 // pred_region
        %s147 = ssub.s32 %s18, 1
        // Predicated region
        $region13: #{tpu_custom_call.1} parent=11 // pred_check
          %p148 = pneg %p65
        $region14: #{tpu_custom_call.1} parent=11 // pred_check_branch
          %150 = sbr.rel (%p148) target = $region16
        $region15: #{tpu_custom_call.1} parent=11 // pred_region
          %s152 = ssub.s32 512, 512
          %153 = vsyncadd [#allocation6], %s152
          %s154 = sshll.u32 [#allocation5], 4
          %s155 = int_to_ptr.vmem [resolvable:$true] %s154
          %160 = dma.hbm_to_vmem [thread:$0]  %s1, 512, %s155, [#allocation6], 128, 128, 8
        $region16: #{tpu_custom_call.1} parent=11 // pred_fallthru
          _
      $region12: #{tpu_custom_call.1} parent=5 // pred_fallthru
        _
      %p161 = scmp.lt.s32.totalorder %s18, 2
      // Predicated region
      $region17: #{tpu_custom_call.1} parent=5 // pred_check
        %p162 = pneg %p161
      $region18: #{tpu_custom_call.1} parent=5 // pred_check_branch
        %164 = sbr.rel (%p162) target = $region20
      $region19: #{tpu_custom_call.1} parent=5 // pred_region
        // Predicated region
        $region21: #{tpu_custom_call.1} parent=19 // pred_check
          %p165 = pneg %p38
        $region22: #{tpu_custom_call.1} parent=19 // pred_check_branch
          %167 = sbr.rel (%p165) target = $region24
        $region23: #{tpu_custom_call.1} parent=19 // pred_region
          %s168 = sand.u32 %s28, 1
          %s169 = scalar_lea.sflag [#allocation3], %s168
          %s170 = sand.u32 %s28, 1
          %s171 = smul.addr %s170, 80
          %s172 = scalar_lea.vmem [#allocation2], %s171
          %s173 = smul.u32 2, %s18
          %s175 = ssub.s32 1280, 1280
          %176 = vsyncadd %s169, %s175
          %s177 = smul.addr %s173, 128
          %s178 = scalar_lea.hbm %s0, %s177
          %s179 = sshll.u32 %s172, 4
          %s180 = int_to_ptr.vmem [resolvable:$true] %s179
          %185 = dma.hbm_to_vmem [thread:$0]  %s178, 1280, %s180, %s169, 512, 256, 16
        $region24: #{tpu_custom_call.1} parent=19 // pred_fallthru
          _
      $region20: #{tpu_custom_call.1} parent=5 // pred_fallthru
        _
      %p186 = scmp.le.s32.totalorder 1, %s18
      %p187 = scmp.lt.s32.totalorder %s18, 3
      %p188 = pnand %p186, %p187
      %p189 = pneg %p188
      // Predicated region
      $region25: #{tpu_custom_call.1} parent=5 // pred_check
        _
      $region26: #{tpu_custom_call.1} parent=5 // pred_check_branch
        %191 = sbr.rel (%p188) target = $region28
      $region27: #{tpu_custom_call.1} parent=5 // pred_region
        %s192 = ssub.s32 %s18, 1
        %s193 = sand.u32 %s31, 1
        %s194 = scalar_lea.sflag [#allocation3], %s193
        %s195 = sand.u32 %s31, 1
        %s196 = smul.addr %s195, 80
        %s197 = scalar_lea.vmem [#allocation2], %s196
        // Predicated region
        $region29: #{tpu_custom_call.1} parent=27 // pred_check
          %p198 = pneg %p44
        $region30: #{tpu_custom_call.1} parent=27 // pred_check_branch
          %200 = sbr.rel (%p198) target = $region32
        $region31: #{tpu_custom_call.1} parent=27 // pred_region
          %201 = dma.done %s194, 1280
        $region32: #{tpu_custom_call.1} parent=27 // pred_fallthru
          _
        // Predicated region
        $region33: #{tpu_custom_call.1} parent=27 // pred_check
          %p202 = pneg %p65
        $region34: #{tpu_custom_call.1} parent=27 // pred_check_branch
          %204 = sbr.rel (%p202) target = $region36
        $region35: #{tpu_custom_call.1} parent=27 // pred_region
          %205 = dma.done [#allocation6], 512
        $region36: #{tpu_custom_call.1} parent=27 // pred_fallthru
          _
        %s206 = sand.u32 %s31, 1
        %s207 = scalar_lea.sflag [#allocation3], %s206
        %s208 = sand.u32 %s31, 1
        %s209 = smul.addr %s208, 80
        %s210 = scalar_lea.vmem [#allocation2], %s209
        %p211 = pneg %p44
        %p212 = pneg %p41
        %p213 = pneg %p65
        %p214 = pneg %p62
        %p215 = pneg %p91
        %p216 = pneg %p88
        %s217 = sand.u32 %s78, 1
        %s218 = scalar_lea.sflag [#allocation4], %s217
        %s219 = sand.u32 %s78, 1
        %s220 = smul.addr %s219, 64
        %s221 = scalar_lea.vmem [#allocation7], %s220
        %p222 = pneg %p112
        %p223 = pneg %p109
        %p224 = pneg %p133
        %p225 = pneg %p130
        %s226 = smul.u32 2, %s23
        %s227 = smul.u32 2, %s23
        %p228 = scmp.eq.s32.totalorder %s23, 0
        // Predicated region
        $region37: #{tpu_custom_call.1} parent=27 // pred_check
          %p229 = pneg %p228
        $region38: #{tpu_custom_call.1} parent=27 // pred_check_branch
          %231 = sbr.rel (%p229) target = $region40
        $region39: #{tpu_custom_call.1} parent=27 // pred_region
          %vm232 = vcmask 7168
          %233 = vst.msk [vmem:[%s3] sm:$0xff] %vm232, 0.0
          %234 = vst.msk [vmem:[%s3 + $0x8] sm:$0xff] %vm232, 0.0
          %235 = vst.msk [vmem:[%s3 + $0x10] sm:$0xff] %vm232, 0.0
          %236 = vst.msk [vmem:[%s3 + $0x18] sm:$0xff] %vm232, 0.0
          %237 = vst.msk [vmem:[%s4] sm:$0xff] %vm232, 0.0
          %238 = vst.msk [vmem:[%s4 + $0x8] sm:$0xff] %vm232, 0.0
          %239 = vst.msk [vmem:[%s4 + $0x10] sm:$0xff] %vm232, 0.0
          %240 = vst.msk [vmem:[%s4 + $0x18] sm:$0xff] %vm232, 0.0
        $region40: #{tpu_custom_call.1} parent=27 // pred_fallthru
          _
        %v241 = vld [vmem:[#allocation5] sm:$0xff]
        %v242 = vld [vmem:[#allocation5 + $0x8] sm:$0xff]
        %v243 = vld [vmem:[#allocation5 + $0x10] sm:$0xff]
        %v244 = vld [vmem:[#allocation5 + $0x18] sm:$0xff]
        %v245 = vld [vmem:[%s197] sm:$0xff]
        %v246 = vld [vmem:[%s197 + $0x8] sm:$0xff]
        %v247 = vld [vmem:[%s197 + $0x10] sm:$0xff]
        %v248 = vld [vmem:[%s197 + $0x18] sm:$0xff]
        %v249 = vld [vmem:[%s197 + $0x20] sm:$0xff]
        %v250 = vld [vmem:[%s197 + $0x28] sm:$0xff]
        %v251 = vld [vmem:[%s197 + $0x30] sm:$0xff]
        %v252 = vld [vmem:[%s197 + $0x38] sm:$0xff]
        %v253 = vld [vmem:[%s197 + $0x40] sm:$0xf]
        %v254 = vld [vmem:[%s197 + $0x48] sm:$0xf]
        %vm255 = vcmask 293888
        %v257 = vsel %vm255, %v241, 0
        %v260 = vsel %vm255, %v242, 0
        %v263 = vsel %vm255, %v243, 0
        %v266 = vsel %vm255, %v244, 0
        %vm268 = vcmask 1043456
        %v270 = vsel %vm268, %v253, 0
        %v273 = vsel %vm268, %v254, 0
        %275 = vmatprep.subr.mxu0 0.0
        %276 = vmatpush1.msra.mxu0 0.0
        %277 = vmatprep.subr.mxu0 0.0
        %278 = vmatpush1.msra.mxu0 0.0
        %279 = vmatprep.subr.mxu0 0.0
        %280 = vmatpush1.msra.mxu0 0.0
        %281 = vmatprep.subr.mxu0 0.0
        %282 = vmatpush1.msra.mxu0 0.0
        %283 = vmatprep.subr.mxu0 0.0
        %284 = vmatpush1.msra.mxu0 0.0
        %285 = vmatprep.subr.mxu0 0.0
        %286 = vmatpush1.msra.mxu0 0.0
        %287 = vmatprep.subr.mxu0 0.0
        %288 = vmatpush1.msra.mxu0 0.0
        %289 = vmatprep.subr.mxu0 0.0
        %290 = vmatpush1.msra.mxu0 0.0
        %291 = vmatprep.subr.mxu0 0.0
        %292 = vmatpush1.msra.mxu0 0.0
        %293 = vmatprep.subr.mxu0 0.0
        %294 = vmatpush1.msra.mxu0 0.0
        %295 = vmatprep.subr.mxu0 0.0
        %296 = vmatpush1.msra.mxu0 0.0
        %297 = vmatprep.subr.mxu0 %v273
        %298 = vmatpush1.msra.mxu0 %v270
        %299 = vmatprep.subr.mxu0 %v252
        %300 = vmatpush1.msra.mxu0 %v251
        %301 = vmatprep.subr.mxu0 %v250
        %302 = vmatpush1.msra.mxu0 %v249
        %303 = vmatprep.subr.mxu0 %v248
        %304 = vmatpush1.msra.mxu0 %v247
        %305 = vmatprep.subr.mxu0 %v246
        %306 = vmatpush1.msra.mxu0 %v245
        %307 = vmatprep.subr.mxu0 0.0
        %308 = vmatpush2.msra.mxu0 0.0
        %309 = vmatprep.subr.mxu0 0.0
        %310 = vmatpush2.msra.mxu0 0.0
        %311 = vmatprep.subr.mxu0 0.0
        %312 = vmatpush2.msra.mxu0 0.0
        %313 = vmatprep.subr.mxu0 0.0
        %314 = vmatpush2.msra.mxu0 0.0
        %315 = vmatprep.subr.mxu0 0.0
        %316 = vmatpush2.msra.mxu0 0.0
        %317 = vmatprep.subr.mxu0 0.0
        %318 = vmatpush2.msra.mxu0 0.0
        %319 = vmatprep.subr.mxu0 0.0
        %320 = vmatpush2.msra.mxu0 0.0
        %321 = vmatprep.subr.mxu0 0.0
        %322 = vmatpush2.msra.mxu0 0.0
        %323 = vmatprep.subr.mxu0 0.0
        %324 = vmatpush2.msra.mxu0 0.0
        %325 = vmatprep.subr.mxu0 0.0
        %326 = vmatpush2.msra.mxu0 0.0
        %327 = vmatprep.subr.mxu0 0.0
        %328 = vmatpush2.msra.mxu0 0.0
        %329 = vmatprep.subr.mxu0 0.0
        %330 = vmatpush2.msra.mxu0 0.0
        %331 = vmatprep.subr.mxu0 0.0
        %332 = vmatpush2.msra.mxu0 0.0
        %333 = vmatprep.subr.mxu0 0.0
        %334 = vmatpush2.msra.mxu0 0.0
        %335 = vmatprep.subr.mxu0 0.0
        %336 = vmatpush2.msra.mxu0 0.0
        %337 = vmatprep.subr.mxu0 0.0
        %338 = vmatpush2.msra.mxu0 0.0
        %339 = vmatprep.mubr.f32.mxu0 0.0
        %340 = vmatmul.mubr.f32.gmra.mxu0 %v257
        %v341 = vpop.f32.mrf.mxu0
        %v342 = vadd.f32 0.0, %v341
        %v343 = vpop.f32.mrf.mxu0
        %v344 = vadd.f32 0.0, %v343
        %345 = vmatprep.mubr.f32.mxu0 0.0
        %346 = vmatmul.mubr.f32.gmra.mxu0 %v260
        %v347 = vpop.f32.mrf.mxu0
        %v348 = vadd.f32 0.0, %v347
        %v349 = vpop.f32.mrf.mxu0
        %v350 = vadd.f32 0.0, %v349
        %351 = vmatprep.mubr.f32.mxu0 0.0
        %352 = vmatmul.mubr.f32.gmra.mxu0 %v263
        %v353 = vpop.f32.mrf.mxu0
        %v354 = vadd.f32 0.0, %v353
        %v355 = vpop.f32.mrf.mxu0
        %v356 = vadd.f32 0.0, %v355
        %357 = vmatprep.mubr.f32.mxu0 0.0
        %358 = vmatmul.mubr.f32.gmra.mxu0 %v266
        %v359 = vpop.f32.mrf.mxu0
        %v360 = vadd.f32 0.0, %v359
        %v361 = vpop.f32.mrf.mxu0
        %v362 = vadd.f32 0.0, %v361
        %363 = vdwg.mxu0
        %364 = vst [vmem:[%s221] sm:$0xff] %v342
        %365 = vst [vmem:[%s221 + $0x8] sm:$0xff] %v344
        %366 = vst [vmem:[%s221 + $0x10] sm:$0xff] %v348
        %367 = vst [vmem:[%s221 + $0x18] sm:$0xff] %v350
        %368 = vst [vmem:[%s221 + $0x20] sm:$0xff] %v354
        %369 = vst [vmem:[%s221 + $0x28] sm:$0xff] %v356
        %370 = vst [vmem:[%s221 + $0x30] sm:$0xff] %v360
        %371 = vst [vmem:[%s221 + $0x38] sm:$0xff] %v362
        %v372 = vld [vmem:[%s3] sm:$0xff]
        %v373 = vld [vmem:[%s3 + $0x8] sm:$0xff]
        %v374 = vld [vmem:[%s3 + $0x10] sm:$0xff]
        %v375 = vld [vmem:[%s3 + $0x18] sm:$0xff]
        %v376 = vadd.f32 %v342, %v344
        %377 = vadd.xlane.f32.xlu0 %v376
        %v378 = vpop.xlane.xlu0 %377
        %v379 = vadd.f32 %v348, %v350
        %380 = vadd.xlane.f32.xlu0 %v379
        %v381 = vpop.xlane.xlu0 %380
        %v382 = vadd.f32 %v354, %v356
        %383 = vadd.xlane.f32.xlu0 %v382
        %v384 = vpop.xlane.xlu0 %383
        %v385 = vadd.f32 %v360, %v362
        %386 = vadd.xlane.f32.xlu0 %v385
        %v387 = vpop.xlane.xlu0 %386
        %v388 = vadd.f32 %v372, %v378
        %v389 = vadd.f32 %v373, %v381
        %v390 = vadd.f32 %v374, %v384
        %v391 = vadd.f32 %v375, %v387
        %vm392 = vcmask 7168
        %393 = vst.msk [vmem:[%s3] sm:$0xff] %vm392, %v388
        %394 = vst.msk [vmem:[%s3 + $0x8] sm:$0xff] %vm392, %v389
        %395 = vst.msk [vmem:[%s3 + $0x10] sm:$0xff] %vm392, %v390
        %396 = vst.msk [vmem:[%s3 + $0x18] sm:$0xff] %vm392, %v391
        %v397 = vld [vmem:[%s4] sm:$0xff]
        %v398 = vld [vmem:[%s4 + $0x8] sm:$0xff]
        %v399 = vld [vmem:[%s4 + $0x10] sm:$0xff]
        %v400 = vld [vmem:[%s4 + $0x18] sm:$0xff]
        %v401 = vmul.f32 %v342, %v342
        %v402 = vmul.f32 %v344, %v344
        %v403 = vmul.f32 %v348, %v348
        %v404 = vmul.f32 %v350, %v350
        %v405 = vmul.f32 %v354, %v354
        %v406 = vmul.f32 %v356, %v356
        %v407 = vmul.f32 %v360, %v360
        %v408 = vmul.f32 %v362, %v362
        %v409 = vadd.f32 %v401, %v402
        %410 = vadd.xlane.f32.xlu0 %v409
        %v411 = vpop.xlane.xlu0 %410
        %v412 = vadd.f32 %v403, %v404
        %413 = vadd.xlane.f32.xlu0 %v412
        %v414 = vpop.xlane.xlu0 %413
        %v415 = vadd.f32 %v405, %v406
        %416 = vadd.xlane.f32.xlu0 %v415
        %v417 = vpop.xlane.xlu0 %416
        %v418 = vadd.f32 %v407, %v408
        %419 = vadd.xlane.f32.xlu0 %v418
        %v420 = vpop.xlane.xlu0 %419
        %v421 = vadd.f32 %v397, %v411
        %v422 = vadd.f32 %v398, %v414
        %v423 = vadd.f32 %v399, %v417
        %v424 = vadd.f32 %v400, %v420
        %425 = vst.msk [vmem:[%s4] sm:$0xff] %vm392, %v421
        %426 = vst.msk [vmem:[%s4 + $0x8] sm:$0xff] %vm392, %v422
        %427 = vst.msk [vmem:[%s4 + $0x10] sm:$0xff] %vm392, %v423
        %428 = vst.msk [vmem:[%s4 + $0x18] sm:$0xff] %vm392, %v424
        %s429 = sand.u32 %s78, 1
        %s430 = scalar_lea.sflag [#allocation4], %s429
        %s431 = sand.u32 %s78, 1
        %s432 = smul.addr %s431, 64
        %s433 = scalar_lea.vmem [#allocation7], %s432
        // Predicated region
        $region41: #{tpu_custom_call.1} parent=27 // pred_check
          %p434 = pneg %p88
        $region42: #{tpu_custom_call.1} parent=27 // pred_check_branch
          %436 = sbr.rel (%p434) target = $region44
        $region43: #{tpu_custom_call.1} parent=27 // pred_region
          %s437 = smul.u32 2, %s23
          %s439 = ssub.s32 1024, 1024
          %440 = vsyncadd %s430, %s439
          %s441 = smul.addr %s437, 128
          %s442 = scalar_lea.hbm %s2, %s441
          %s443 = sshll.u32 %s433, 4
          %s444 = int_to_ptr.vmem [resolvable:$true] %s443
          %449 = dma.vmem_to_hbm [thread:$0]  %s444, 1024, %s442, %s430, 256, 512, 16
        $region44: #{tpu_custom_call.1} parent=27 // pred_fallthru
          _
        // Predicated region
        $region45: #{tpu_custom_call.1} parent=27 // pred_check
          %p450 = pneg %p109
        $region46: #{tpu_custom_call.1} parent=27 // pred_check_branch
          %452 = sbr.rel (%p450) target = $region48
        $region47: #{tpu_custom_call.1} parent=27 // pred_region
          _
        $region48: #{tpu_custom_call.1} parent=27 // pred_fallthru
          _
        // Predicated region
        $region49: #{tpu_custom_call.1} parent=27 // pred_check
          %p453 = pneg %p130
        $region50: #{tpu_custom_call.1} parent=27 // pred_check_branch
          %455 = sbr.rel (%p453) target = $region52
        $region51: #{tpu_custom_call.1} parent=27 // pred_region
          _
        $region52: #{tpu_custom_call.1} parent=27 // pred_fallthru
          _
        // Predicated region
        $region53: #{tpu_custom_call.1} parent=27 // pred_check
          %p456 = pneg %p109
        $region54: #{tpu_custom_call.1} parent=27 // pred_check_branch
          %458 = sbr.rel (%p456) target = $region56
        $region55: #{tpu_custom_call.1} parent=27 // pred_region
          _
        $region56: #{tpu_custom_call.1} parent=27 // pred_fallthru
          _
        // Predicated region
        $region57: #{tpu_custom_call.1} parent=27 // pred_check
          %p459 = pneg %p130
        $region58: #{tpu_custom_call.1} parent=27 // pred_check_branch
          %461 = sbr.rel (%p459) target = $region60
        $region59: #{tpu_custom_call.1} parent=27 // pred_region
          _
        $region60: #{tpu_custom_call.1} parent=27 // pred_fallthru
          _
      $region28: #{tpu_custom_call.1} parent=5 // pred_fallthru
        _
      %p462 = scmp.le.s32.totalorder 2, %s18
      // Predicated region
      $region61: #{tpu_custom_call.1} parent=5 // pred_check
        %p463 = pneg %p462
      $region62: #{tpu_custom_call.1} parent=5 // pred_check_branch
        %465 = sbr.rel (%p463) target = $region64
      $region63: #{tpu_custom_call.1} parent=5 // pred_region
        %s466 = ssub.s32 %s18, 2
        // Predicated region
        $region65: #{tpu_custom_call.1} parent=63 // pred_check
          %p467 = pneg %p94
        $region66: #{tpu_custom_call.1} parent=63 // pred_check_branch
          %469 = sbr.rel (%p467) target = $region68
        $region67: #{tpu_custom_call.1} parent=63 // pred_region
          %s470 = sand.u32 %s79, 1
          %s471 = scalar_lea.sflag [#allocation4], %s470
          %s472 = sand.u32 %s79, 1
          %s473 = smul.addr %s472, 64
          %s474 = scalar_lea.vmem [#allocation7], %s473
          %475 = dma.done %s471, 1024
        $region68: #{tpu_custom_call.1} parent=63 // pred_fallthru
          _
      $region64: #{tpu_custom_call.1} parent=5 // pred_fallthru
        _
    $region6: #{tpu_custom_call.1} parent=1 // loop_footer
      %s22 = sadd.s32 1, %s18
    $region7: #{tpu_custom_call.1} parent=1 // loop_footer_branch
      %17 = sbr.rel target = $region3
    $region8: #{tpu_custom_call.1} parent=1 // loop_exit
      _
    %476 = vsyncpa [#allocation3], 1
    %s477 = scalar_lea.sflag [#allocation3], 1
    %478 = vsyncpa %s477, 1
    %479 = vsyncpa [#allocation6], 1
    %480 = vsyncpa [#allocation4], 1
    %s481 = scalar_lea.sflag [#allocation4], 1
    %482 = vsyncpa %s481, 1

</llo_original>
